<compile_context>
chip_gen: v7x
topology: tpu7x:2x2x1
jax: 0.10.0
libtpu: 0.0.40
codegen_flags: <defaults>
</compile_context>

<pallas_src>
import jax
import jax.numpy as jnp
from jax.experimental import pallas as pl
from jax.experimental.pallas import tpu as pltpu

KSIZE = 5                 # kernel_size in (3, 5); 5 -> padding 2
PAD = 2 if KSIZE == 5 else 1
KE = KSIZE ** 3


def _round_up(x, m):
    return ((x + m - 1) // m) * m


def _pick_d_slab(D):
    # Output-block sublane dim must be a multiple of 8 (or the full D).
    return 8 if D % 8 == 0 else D


def _pick_c_chunk(C, bytes_per_channel_slab):
    # Target ~4 MiB input chunks; force >=2 chunks when possible so the
    # reduction axis actually pipelines.
    target = max(1, (4 << 20) // max(bytes_per_channel_slab, 1))
    tc = min(C, target)
    if C > 1:
        tc = min(tc, max(1, C // 2))
    tc = max(tc, 1)
    while C % tc:
        tc -= 1
    return tc


def _pick_lane_chunk(L):
    for lc in (512, 384, 256, 128):
        if L % lc == 0:
            return lc
    return L          # fallback: single (possibly wide) chunk


def _vmem_limit(working_set_bytes):
    # Explicit budget with headroom instead of the 32 MiB default scoped limit.
    return int(min(max(2 * working_set_bytes + (4 << 20), 32 << 20), 100 << 20))


# ----------------------------------------------------------------------------
# Pass 1: fused per-channel mean / max reduction.
# ----------------------------------------------------------------------------
def _make_reduce_kernel(C_total, TC, TD, L):
    inv_c = 1.0 / C_total

    def kernel(x_ref, o_ref, sum_ref, max_ref):
        # x_ref : (1, TC, TD, L)   one C-chunk of one D-slab
        # o_ref : (1, 2, TD, L)    avg (ch 0) / max (ch 1), resident across C
        c = pl.program_id(2)

        @pl.when(c == 0)
        def _():
            sum_ref[...] = jnp.zeros((TD, L), jnp.float32)
            max_ref[...] = jnp.full((TD, L), -jnp.inf, jnp.float32)

        s = sum_ref[...]
        m = max_ref[...]
        for ci in range(TC):                       # fused single pass over C
            row = x_ref[0, ci].astype(jnp.float32)  # one load feeds sum & max
            s = s + row
            m = jnp.maximum(m, row)
        sum_ref[...] = s
        max_ref[...] = m

        @pl.when(c == pl.num_programs(2) - 1)
        def _():
            o_ref[0, 0] = s * inv_c
            o_ref[0, 1] = m

    return kernel


# ----------------------------------------------------------------------------
# Pass 2: depthwise conv (folded pointwise) + sigmoid on the avg/max field.
# ----------------------------------------------------------------------------
def _make_conv_kernel(D, H, W, TD, LC):
    K = KSIZE
    L = H * W
    TDH = TD + 2 * PAD                      # slab rows incl. depth halo
    F0 = PAD * (W + 1)                      # required zero halo along lanes
    FL = _round_up(F0, 128)                 # 128-aligned left halo (DMA friendly)
    LP = _round_up(FL + L + F0, 128)        # padded lane width, multiple of 128
    LCK = LC + K - 1
    n_lane_chunks = L // LC

    def kernel(w_ref, mask_ref, y_hbm, o_ref, pbuf, sem):
        # w_ref   : (2*K^3,)          folded depthwise*pointwise weights (SMEM)
        # mask_ref: (K, L)            per-kw W-boundary masks (VMEM)
        # y_hbm   : (N, 2, D+2P, L)   D-padded avg/max field (HBM, pl.ANY)
        # o_ref   : (1, 1, TD, L)     output slab (dense, 128-aligned stores)
        # pbuf    : (2, TDH, LP)      lane-halo'd avg/max slab scratch (VMEM)
        n = pl.program_id(0)
        s = pl.program_id(1)

        # Fetch this slab (incl. +/-PAD depth-halo rows) straight into the
        # lane-halo'd scratch; the halo lanes are disjoint from the DMA target.
        d0 = pl.multiple_of(s * TD, TD)
        cp = pltpu.make_async_copy(
            y_hbm.at[n, :, pl.ds(d0, TDH), :],
            pbuf.at[:, :, pl.ds(FL, L)],
            sem)
        cp.start()

        # Zero the lane halos and read the SMEM weights while the DMA flies.
        pbuf[:, :, :FL] = jnp.zeros((2, TDH, FL), jnp.float32)
        pbuf[:, :, FL + L:] = jnp.zeros((2, TDH, LP - FL - L), jnp.float32)
        wa = [w_ref[i] for i in range(KE)]
        wm = [w_ref[KE + i] for i in range(KE)]

        cp.wait()

        for j in range(n_lane_chunks):
            q0 = j * LC
            # K per-kw accumulators in the *unshifted* lane frame: each
            # (stream, kd, kh) window is read once and reused by all 5 kw taps.
            acc = [None] * K
            for kd in range(K):
                for kh in range(K):
                    base = FL - F0 + kh * W + q0
                    ta = pbuf[0, kd:kd + TD, base:base + LCK]
                    tm = pbuf[1, kd:kd + TD, base:base + LCK]
                    for kw in range(K):
                        i = (kd * K + kh) * K + kw
                        t = wa[i] * ta + wm[i] * tm
                        acc[kw] = t if acc[kw] is None else acc[kw] + t

            # Combine: one lane shift + (at most) one mask multiply per kw.
            out = None
            for kw in range(K):
                contrib = acc[kw][:, kw:kw + LC]
                if kw != PAD:                       # center mask is all-ones
                    contrib = contrib * mask_ref[kw:kw + 1, q0:q0 + LC]
                out = contrib if out is None else out + contrib

            o_ref[0, 0, :, q0:q0 + LC] = jax.nn.sigmoid(out)

    return kernel, TDH, LP


# ----------------------------------------------------------------------------
# Wrapper
# ----------------------------------------------------------------------------
def spatial_attention(x, dw, pw):
    """x: (N, C, D, H, W); dw: (2,1,K,K,K); pw: (1,2,1,1,1). Returns (N,1,D,H,W) f32."""
    N, C, D, H, W = x.shape
    K = KSIZE
    L = H * W

    # Flatten (H, W) onto the lane axis (contiguous reshape, no extra HBM pass).
    x2 = x.reshape(N, C, D, L)

    TD = _pick_d_slab(D)
    n_slabs = D // TD
    TC = _pick_c_chunk(C, TD * L * x2.dtype.itemsize)
    n_cchunks = C // TC
    LC = _pick_lane_chunk(L)

    # ---- Pass 1: channel mean/max ------------------------------------------
    reduce_ws = (2 * TC * TD * L * x2.dtype.itemsize   # double-buffered input
                 + 2 * 2 * TD * L * 4                  # double-buffered output
                 + 2 * TD * L * 4)                     # sum/max scratch
    y = pl.pallas_call(
        _make_reduce_kernel(C, TC, TD, L),
        out_shape=jax.ShapeDtypeStruct((N, 2, D, L), jnp.float32),
        grid=(N, n_slabs, n_cchunks),
        in_specs=[pl.BlockSpec((1, TC, TD, L), lambda n, s, c: (n, c, s, 0))],
        out_specs=pl.BlockSpec((1, 2, TD, L), lambda n, s, c: (n, 0, s, 0)),
        scratch_shapes=[pltpu.VMEM((TD, L), jnp.float32),
                        pltpu.VMEM((TD, L), jnp.float32)],
        compiler_params=pltpu.CompilerParams(
            dimension_semantics=("parallel", "parallel", "arbitrary"),
            vmem_limit_bytes=_vmem_limit(reduce_ws)),
    )(x2)

    # Pad the *small* 2-channel field along D so every conv slab can grab its
    # +/-PAD depth halo with a plain window DMA (negligible extra traffic).
    y_pad = jnp.pad(y, ((0, 0), (0, 0), (PAD, PAD), (0, 0)))

    # Fold the 1x1x1 pointwise conv into the depthwise weights.
    w_avg = (pw[0, 0, 0, 0, 0] * dw[0, 0]).reshape(-1)
    w_max = (pw[0, 1, 0, 0, 0] * dw[1, 0]).reshape(-1)
    w_flat = jnp.concatenate([w_avg, w_max]).astype(jnp.float32)   # (2*K^3,)

    # Per-kw validity masks along W (kill wrap-around across flattened H rows).
    w_pos = jnp.arange(L, dtype=jnp.int32) % W                     # (L,)
    col = w_pos[None, :] + jnp.arange(K, dtype=jnp.int32)[:, None] - PAD
    masks = ((col >= 0) & (col < W)).astype(jnp.float32)           # (K, L)

    # ---- Pass 2: conv + sigmoid ---------------------------------------------
    conv_kernel, TDH, LP = _make_conv_kernel(D, H, W, TD, LC)
    conv_ws = (2 * K * L * 4            # double-buffered masks
               + 2 * TD * L * 4         # double-buffered output
               + 2 * TDH * LP * 4       # lane-halo'd slab scratch
               + 2 * KE * 4)            # SMEM weights
    out_flat = pl.pallas_call(
        conv_kernel,
        out_shape=jax.ShapeDtypeStruct((N, 1, D, L), jnp.float32),
        grid=(N, n_slabs),
        in_specs=[
            pl.BlockSpec(memory_space=pltpu.MemorySpace.SMEM),     # weights
            pl.BlockSpec((K, L), lambda n, s: (0, 0)),             # masks
            pl.BlockSpec(memory_space=pl.ANY),                     # y_pad (HBM)
        ],
        out_specs=pl.BlockSpec((1, 1, TD, L), lambda n, s: (n, 0, s, 0)),
        scratch_shapes=[pltpu.VMEM((2, TDH, LP), jnp.float32),
                        pltpu.SemaphoreType.DMA(())],
        compiler_params=pltpu.CompilerParams(
            dimension_semantics=("parallel", "parallel"),
            vmem_limit_bytes=_vmem_limit(conv_ws)),
    )(w_flat, masks, y_pad)

    return out_flat.reshape(N, 1, D, H, W)


# ----------------------------------------------------------------------------
# Pure-JAX reference matching the PyTorch forward exactly.
# ----------------------------------------------------------------------------
def reference(x, dw, pw):
    avg = jnp.mean(x, axis=1, keepdims=True)
    mx = jnp.max(x, axis=1, keepdims=True)
    y = jnp.concatenate([avg, mx], axis=1)                         # (N,2,D,H,W)
    y = jax.lax.conv_general_dilated(
        y, dw, window_strides=(1, 1, 1),
        padding=[(PAD, PAD)] * 3, feature_group_count=2,
        dimension_numbers=("NCDHW", "OIDHW", "NCDHW"))
    y = jax.lax.conv_general_dilated(
        y, pw, window_strides=(1, 1, 1), padding="VALID",
        dimension_numbers=("NCDHW", "OIDHW", "NCDHW"))
    return jax.nn.sigmoid(y)


if __name__ == "__main__":
    key = jax.random.PRNGKey(0)
    k1, k2, k3 = jax.random.split(key, 3)

    # Small shapes consistent with a 3D (N, C, D, H, W) volume input.
    N, C, D, H, W = 2, 4, 8, 16, 16
    x = jax.random.normal(k1, (N, C, D, H, W), jnp.float32)

    # Deterministic synthetic weights (kaiming-uniform-style bounds, no bias,
    # matching nn.Conv3d parameter shapes).
    bd = 1.0 / (1 * KSIZE ** 3) ** 0.5
    dw = jax.random.uniform(k2, (2, 1, KSIZE, KSIZE, KSIZE), jnp.float32, -bd, bd)
    bp = 1.0 / (2 * 1 * 1 * 1) ** 0.5
    pw = jax.random.uniform(k3, (1, 2, 1, 1, 1), jnp.float32, -bp, bp)

    out = jax.block_until_ready(spatial_attention(x, dw, pw))

    ref = reference(x, dw, pw)
    assert out.shape == (N, 1, D, H, W), out.shape
    assert jnp.allclose(out, ref, atol=1e-5, rtol=1e-5), float(
        jnp.max(jnp.abs(out - ref)))
    print("KERNEL_OK")
</pallas_src>

<mosaic_0001>
module attributes {stable_mosaic.version = 11 : i64} {
  func.func @kernel(%arg0: i32, %arg1: i32, %arg2: i32, %arg3: memref<1x2x8x256xf32, #tpu.memory_space<vmem>>, %arg4: memref<1x2x8x256xf32, #tpu.memory_space<vmem>>, %arg5: memref<8x256xf32, #tpu.memory_space<vmem>>, %arg6: memref<8x256xf32, #tpu.memory_space<vmem>>) attributes {dimension_semantics = [#tpu.dimension_semantics<parallel>, #tpu.dimension_semantics<parallel>, #tpu.dimension_semantics<arbitrary>], iteration_bounds = array<i64: 2, 1, 2>, scalar_prefetch = 0 : i64, scratch_operands = 2 : i64, tpu.core_type = #tpu.core_type<tc>, window_params = [{transform_indices = @transform_0, window_bounds = array<i64: 1, 2, 8, 256>}, {transform_indices = @transform_1, window_bounds = array<i64: 1, 2, 8, 256>}]} {
    %c0_i32 = arith.constant 0 : i32
    %0 = arith.cmpi eq, %arg2, %c0_i32 : i32
    %1 = arith.extui %0 : i1 to i32
    %c0_i32_0 = arith.constant 0 : i32
    %2 = arith.cmpi ne, %1, %c0_i32_0 : i32
    scf.if %2 {
      %cst = arith.constant 0.000000e+00 : f32
      %18 = vector.broadcast %cst : f32 to vector<8x256xf32>
      %c0_16 = arith.constant 0 : index
      %c0_17 = arith.constant 0 : index
      %19 = vector.load %arg5[%c0_16, %c0_17] : memref<8x256xf32, #tpu.memory_space<vmem>>, vector<8x256xf32>
      tpu.vector_store %arg5[%c0_16, %c0_17], %18 {strides = array<i32>} : memref<8x256xf32, #tpu.memory_space<vmem>>, vector<8x256xf32>,
      %cst_18 = arith.constant 0xFF800000 : f32
      %20 = vector.broadcast %cst_18 : f32 to vector<8x256xf32>
      %c0_19 = arith.constant 0 : index
      %c0_20 = arith.constant 0 : index
      %21 = vector.load %arg6[%c0_19, %c0_20] : memref<8x256xf32, #tpu.memory_space<vmem>>, vector<8x256xf32>
      tpu.vector_store %arg6[%c0_19, %c0_20], %20 {strides = array<i32>} : memref<8x256xf32, #tpu.memory_space<vmem>>, vector<8x256xf32>,
    } else {
    }
    %c0 = arith.constant 0 : index
    %c0_1 = arith.constant 0 : index
    %3 = vector.load %arg5[%c0, %c0_1] : memref<8x256xf32, #tpu.memory_space<vmem>>, vector<8x256xf32>
    %c0_2 = arith.constant 0 : index
    %c0_3 = arith.constant 0 : index
    %4 = vector.load %arg6[%c0_2, %c0_3] : memref<8x256xf32, #tpu.memory_space<vmem>>, vector<8x256xf32>
    %c0_4 = arith.constant 0 : index
    %c0_5 = arith.constant 0 : index
    %c0_6 = arith.constant 0 : index
    %c0_7 = arith.constant 0 : index
    %5 = vector.load %arg3[%c0_4, %c0_5, %c0_6, %c0_7] : memref<1x2x8x256xf32, #tpu.memory_space<vmem>>, vector<1x1x8x256xf32>
    %6 = vector.shape_cast %5 : vector<1x1x8x256xf32> to vector<8x256xf32>
    %7 = arith.addf %3, %6 : vector<8x256xf32>
    %8 = arith.maximumf %4, %6 : vector<8x256xf32>
    %c0_8 = arith.constant 0 : index
    %c1 = arith.constant 1 : index
    %c0_9 = arith.constant 0 : index
    %c0_10 = arith.constant 0 : index
    %9 = vector.load %arg3[%c0_8, %c1, %c0_9, %c0_10] : memref<1x2x8x256xf32, #tpu.memory_space<vmem>>, vector<1x1x8x256xf32>
    %10 = vector.shape_cast %9 : vector<1x1x8x256xf32> to vector<8x256xf32>
    %11 = arith.addf %7, %10 : vector<8x256xf32>
    %12 = arith.maximumf %8, %10 : vector<8x256xf32>
    %c0_11 = arith.constant 0 : index
    %c0_12 = arith.constant 0 : index
    %13 = vector.load %arg5[%c0_11, %c0_12] : memref<8x256xf32, #tpu.memory_space<vmem>>, vector<8x256xf32>
    tpu.vector_store %arg5[%c0_11, %c0_12], %11 {strides = array<i32>} : memref<8x256xf32, #tpu.memory_space<vmem>>, vector<8x256xf32>,
    %c0_13 = arith.constant 0 : index
    %c0_14 = arith.constant 0 : index
    %14 = vector.load %arg6[%c0_13, %c0_14] : memref<8x256xf32, #tpu.memory_space<vmem>>, vector<8x256xf32>
    tpu.vector_store %arg6[%c0_13, %c0_14], %12 {strides = array<i32>} : memref<8x256xf32, #tpu.memory_space<vmem>>, vector<8x256xf32>,
    %c1_i32 = arith.constant 1 : i32
    %15 = arith.cmpi eq, %arg2, %c1_i32 : i32
    %16 = arith.extui %15 : i1 to i32
    %c0_i32_15 = arith.constant 0 : i32
    %17 = arith.cmpi ne, %16, %c0_i32_15 : i32
    scf.if %17 {
      %cst = arith.constant 2.500000e-01 : f32
      %18 = vector.broadcast %cst : f32 to vector<8x256xf32>
      %19 = arith.mulf %11, %18 : vector<8x256xf32>
      %c0_16 = arith.constant 0 : index
      %c0_17 = arith.constant 0 : index
      %c0_18 = arith.constant 0 : index
      %c0_19 = arith.constant 0 : index
      %20 = vector.load %arg4[%c0_16, %c0_17, %c0_18, %c0_19] : memref<1x2x8x256xf32, #tpu.memory_space<vmem>>, vector<1x1x8x256xf32>
      %21 = vector.shape_cast %20 : vector<1x1x8x256xf32> to vector<8x256xf32>
      %22 = vector.shape_cast %19 : vector<8x256xf32> to vector<1x1x8x256xf32>
      tpu.vector_store %arg4[%c0_16, %c0_17, %c0_18, %c0_19], %22 {strides = array<i32>} : memref<1x2x8x256xf32, #tpu.memory_space<vmem>>, vector<1x1x8x256xf32>,
      %c0_20 = arith.constant 0 : index
      %c1_21 = arith.constant 1 : index
      %c0_22 = arith.constant 0 : index
      %c0_23 = arith.constant 0 : index
      %23 = vector.load %arg4[%c0_20, %c1_21, %c0_22, %c0_23] : memref<1x2x8x256xf32, #tpu.memory_space<vmem>>, vector<1x1x8x256xf32>
      %24 = vector.shape_cast %23 : vector<1x1x8x256xf32> to vector<8x256xf32>
      %25 = vector.shape_cast %12 : vector<8x256xf32> to vector<1x1x8x256xf32>
      tpu.vector_store %arg4[%c0_20, %c1_21, %c0_22, %c0_23], %25 {strides = array<i32>} : memref<1x2x8x256xf32, #tpu.memory_space<vmem>>, vector<1x1x8x256xf32>,
    } else {
    }
    return
  }
  func.func @transform_0(%arg0: i32, %arg1: i32, %arg2: i32) -> (i32, i32, i32, i32) {
    %c0_i32 = arith.constant 0 : i32
    %c0_i32_0 = arith.constant 0 : i32
    return %arg0, %arg2, %arg1, %c0_i32 : i32, i32, i32, i32
  }
  func.func @transform_1(%arg0: i32, %arg1: i32, %arg2: i32) -> (i32, i32, i32, i32) {
    %c0_i32 = arith.constant 0 : i32
    %c0_i32_0 = arith.constant 0 : i32
    %c0_i32_1 = arith.constant 0 : i32
    return %arg0, %c0_i32, %arg1, %c0_i32_0 : i32, i32, i32, i32
  }
}

</mosaic_0001>

<llo_original>
// kernel: tpu_custom_call.1
$region0: #{tpu_custom_call.1}
  #allocation0 [shape = 'u32[]', space=smem, size = 0x4, offset = 0x4, fixed_abs, tag = 'smem constant byte address 0x4 - core index']
  #allocation1 [shape = 'u32[144,128]{1,0:T(1,128)}', space=vmem, size = 0x12000, scoped, tag = 'internal scratch']
  #allocation2 [shape = 'f32[8,256]{1,0:T(8,128)}', space=vmem, size = 0x2000, scoped, tag = 'scratch operand']
  #allocation3 [shape = 'f32[8,256]{1,0:T(8,128)}', space=vmem, size = 0x2000, scoped, tag = 'scratch operand']
  %s0 = inlined_call_operand.hbm [shape: f32[2,4,8,256], index: 0, kind: input, shape index: {}]
  %s1 = inlined_call_operand.hbm [shape: f32[2,2,8,256], index: 1, kind: output, shape index: {}]
  %s2 = sld [smem:[#allocation0]]
  $region49: #{tpu_custom_call.1} parent=0
    _
  %s4 = ssub.s32 1, %s2
  %s5 = scalar_select 0, %s4, %s2
  $region1: #{tpu_custom_call.1} parent=0
    #allocation4 [shape = 'u8[32768]{0}', space=vmem, size = 0x8000, scoped, tag = 'input window, operand 0']
    #allocation5 [shape = 's32[2]{0}', space=sflag, size = 0x8, scoped, tag = 'scoped memory for tpu_custom_call.1']
    #allocation6 [shape = 's32[2]{0}', space=sflag, size = 0x8, scoped, tag = 'scoped memory for tpu_custom_call.1']
    #allocation7 [shape = 'u8[32768]{0}', space=vmem, size = 0x8000, scoped, tag = 'output window, operand 0']
    %6 = vsyncpa [#allocation5], 0
    %s7 = scalar_lea.sflag [#allocation5], 1
    %8 = vsyncpa %s7, 0
    %9 = vsyncpa [#allocation6], 0
    %s10 = scalar_lea.sflag [#allocation6], 1
    %11 = vsyncpa %s10, 0
    loop: start=0, step=1, limit=6
    $region2: #{tpu_custom_call.1} parent=1 // loop_pre_header
      _
    $region3: #{tpu_custom_call.1} parent=1 // loop_header
      %s13 = sphi 0, %s17
      %p14 = scmp.ge.s32.totalorder %s13, 6
      %s20 = sphi 0, %s39
      %s21 = sphi 0, %s35
      %s22 = sphi 0, %s31
      %s23 = sphi 0, %s20
      %s24 = sphi 0, %s21
      %s25 = sphi 0, %s22
      %s26 = sphi 0, %s23
      %s27 = sphi 0, %s24
      %s28 = sphi 0, %s25
      %s46 = sphi 0, %s48
      %s49 = sphi 0, %s46
      %s50 = sphi 0, %s49
      %s66 = sphi 0, %s50
      %s74 = sphi 0, %s76
      %s77 = sphi 0, %s74
      %s78 = sphi 0, %s77
      %s94 = sphi 0, %s78
    $region4: #{tpu_custom_call.1} parent=1 // loop_header_branch
      %16 = sbr.rel (%p14) target = $region8
    $region5: #{tpu_custom_call.1} parent=1 // loop_body
      %s18 = ssub.s32 %s13, 1
      %s19 = ssub.s32 %s13, 2
      %s29 = sadd.s32 1, %s22
      %p30 = scmp.ge.s32.totalorder %s29, 2
      %s31 = scalar_select %p30, 0, %s29
      %s32 = sadd.s32 1, %s21
      %s33 = scalar_select %p30, %s32, %s21
      %p34 = scmp.ge.s32.totalorder %s33, 1
      %s35 = scalar_select %p34, 0, %s33
      %s36 = sadd.s32 1, %s20
      %s37 = scalar_select %p34, %s36, %s20
      %p38 = scmp.ge.s32.totalorder %s37, 2
      %s39 = scalar_select %p38, 0, %s37
      %s40 = ssub.s32 %s20, %s39
      %s41 = ssub.s32 %s22, %s31
      %s42 = sor.u32 %s40, %s41
      %s43 = ssub.s32 %s21, %s35
      %s44 = sor.u32 %s42, %s43
      %p45 = scmp.eq.s32.totalorder %s44, 0
      %s47 = sadd.s32 %s46, 1
      %s48 = scalar_select %p45, %s46, %s47
      %p51 = pneg %p45
      %p52 = scmp.eq.s32.totalorder %s13, 3
      %p53 = por %p51, %p52
      %p54 = scmp.ne.s32.totalorder %s46, %s49
      %p55 = scmp.eq.s32.totalorder %s13, 0
      %p56 = por %p54, %p55
      %p57 = scmp.ne.s32.totalorder %s46, %s49
      %p58 = scmp.eq.s32.totalorder %s18, 3
      %p59 = por %p57, %p58
      %p60 = scmp.ne.s32.totalorder %s49, %s50
      %p61 = scmp.eq.s32.totalorder %s18, 0
      %p62 = por %p60, %p61
      %p63 = scmp.ne.s32.totalorder %s49, %s50
      %p64 = scmp.eq.s32.totalorder %s19, 3
      %p65 = por %p63, %p64
      %p67 = scmp.ne.s32.totalorder %s50, %s66
      %p68 = scmp.eq.s32.totalorder %s19, 0
      %p69 = por %p67, %p68
      %s70 = ssub.s32 %s20, %s39
      %s71 = ssub.s32 %s21, %s35
      %s72 = sor.u32 %s70, %s71
      %p73 = scmp.eq.s32.totalorder %s72, 0
      %s75 = sadd.s32 %s74, 1
      %s76 = scalar_select %p73, %s74, %s75
      %p79 = pneg %p73
      %p80 = scmp.eq.s32.totalorder %s13, 3
      %p81 = por %p79, %p80
      %p82 = scmp.ne.s32.totalorder %s74, %s77
      %p83 = scmp.eq.s32.totalorder %s13, 0
      %p84 = por %p82, %p83
      %p85 = scmp.ne.s32.totalorder %s74, %s77
      %p86 = scmp.eq.s32.totalorder %s18, 3
      %p87 = por %p85, %p86
      %p88 = scmp.ne.s32.totalorder %s77, %s78
      %p89 = scmp.eq.s32.totalorder %s18, 0
      %p90 = por %p88, %p89
      %p91 = scmp.ne.s32.totalorder %s77, %s78
      %p92 = scmp.eq.s32.totalorder %s19, 3
      %p93 = por %p91, %p92
      %p95 = scmp.ne.s32.totalorder %s78, %s94
      %p96 = scmp.eq.s32.totalorder %s19, 0
      %p97 = por %p95, %p96
      %p98 = scmp.le.s32.totalorder 1, %s13
      %p99 = scmp.lt.s32.totalorder %s13, 5
      %p100 = pnand %p98, %p99
      %p101 = pneg %p100
      // Predicated region
      $region9: #{tpu_custom_call.1} parent=5 // pred_check
        _
      $region10: #{tpu_custom_call.1} parent=5 // pred_check_branch
        %103 = sbr.rel (%p100) target = $region12
      $region11: #{tpu_custom_call.1} parent=5 // pred_region
        %s104 = ssub.s32 %s13, 1
      $region12: #{tpu_custom_call.1} parent=5 // pred_fallthru
        _
      %p105 = scmp.lt.s32.totalorder %s13, 4
      // Predicated region
      $region13: #{tpu_custom_call.1} parent=5 // pred_check
        %p106 = pneg %p105
      $region14: #{tpu_custom_call.1} parent=5 // pred_check_branch
        %108 = sbr.rel (%p106) target = $region16
      $region15: #{tpu_custom_call.1} parent=5 // pred_region
        // Predicated region
        $region17: #{tpu_custom_call.1} parent=15 // pred_check
          %p109 = pneg %p56
        $region18: #{tpu_custom_call.1} parent=15 // pred_check_branch
          %111 = sbr.rel (%p109) target = $region20
        $region19: #{tpu_custom_call.1} parent=15 // pred_region
          %s112 = sand.u32 %s46, 1
          %s113 = scalar_lea.sflag [#allocation5], %s112
          %s114 = sand.u32 %s46, 1
          %s115 = smul.addr %s114, 32
          %s116 = scalar_lea.vmem [#allocation4], %s115
          %s117 = smul.u32 2, %s22
          %s119 = ssub.s32 512, 512
          %120 = vsyncadd %s113, %s119
          %s121 = smul.addr %s21, 2
          %s122 = smul.addr %s117, 2
          %s123 = sadd.s32 %s121, %s122
          %s124 = smul.addr %s20, 8
          %s125 = sadd.s32 %s123, %s124
          %s126 = smul.addr %s125, 128
          %s127 = scalar_lea.hbm %s0, %s126
          %s128 = sshll.u32 %s116, 4
          %s129 = int_to_ptr.vmem [resolvable:$true] %s128
          %134 = dma.hbm_to_vmem [thread:$0]  %s127, 512, %s129, %s113, 256, 256, 16
        $region20: #{tpu_custom_call.1} parent=15 // pred_fallthru
          _
      $region16: #{tpu_custom_call.1} parent=5 // pred_fallthru
        _
      %p135 = scmp.le.s32.totalorder 1, %s13
      %p136 = scmp.lt.s32.totalorder %s13, 5
      %p137 = pnand %p135, %p136
      %p138 = pneg %p137
      // Predicated region
      $region21: #{tpu_custom_call.1} parent=5 // pred_check
        _
      $region22: #{tpu_custom_call.1} parent=5 // pred_check_branch
        %140 = sbr.rel (%p137) target = $region24
      $region23: #{tpu_custom_call.1} parent=5 // pred_region
        %s141 = ssub.s32 %s13, 1
        %s142 = sand.u32 %s49, 1
        %s143 = scalar_lea.sflag [#allocation5], %s142
        %s144 = sand.u32 %s49, 1
        %s145 = smul.addr %s144, 32
        %s146 = scalar_lea.vmem [#allocation4], %s145
        // Predicated region
        $region25: #{tpu_custom_call.1} parent=23 // pred_check
          %p147 = pneg %p62
        $region26: #{tpu_custom_call.1} parent=23 // pred_check_branch
          %149 = sbr.rel (%p147) target = $region28
        $region27: #{tpu_custom_call.1} parent=23 // pred_region
          %150 = dma.done %s143, 512
        $region28: #{tpu_custom_call.1} parent=23 // pred_fallthru
          _
        %s151 = sand.u32 %s49, 1
        %s152 = scalar_lea.sflag [#allocation5], %s151
        %s153 = sand.u32 %s49, 1
        %s154 = smul.addr %s153, 32
        %s155 = scalar_lea.vmem [#allocation4], %s154
        %p156 = pneg %p62
        %p157 = pneg %p59
        %p158 = pneg %p90
        %p159 = pneg %p87
        %s160 = sand.u32 %s77, 1
        %s161 = scalar_lea.sflag [#allocation6], %s160
        %s162 = sand.u32 %s77, 1
        %s163 = smul.addr %s162, 32
        %s164 = scalar_lea.vmem [#allocation7], %s163
        %s165 = smul.u32 2, %s25
        %p166 = scmp.eq.s32.totalorder %s25, 0
        // Predicated region
        $region29: #{tpu_custom_call.1} parent=23 // pred_check
          %p167 = pneg %p166
        $region30: #{tpu_custom_call.1} parent=23 // pred_check_branch
          %169 = sbr.rel (%p167) target = $region32
        $region31: #{tpu_custom_call.1} parent=23 // pred_region
          %170 = vst [vmem:[#allocation2] sm:$0xff] 0.0
          %171 = vst [vmem:[#allocation2 + $0x8] sm:$0xff] 0.0
          %172 = vst [vmem:[#allocation3] sm:$0xff] -inf
          %173 = vst [vmem:[#allocation3 + $0x8] sm:$0xff] -inf
        $region32: #{tpu_custom_call.1} parent=23 // pred_fallthru
          _
        %v174 = vld [vmem:[#allocation2] sm:$0xff]
        %v175 = vld [vmem:[#allocation2 + $0x8] sm:$0xff]
        %v176 = vld [vmem:[#allocation3] sm:$0xff]
        %v177 = vld [vmem:[#allocation3 + $0x8] sm:$0xff]
        %v178 = vld [vmem:[%s146] sm:$0xff]
        %v179 = vld [vmem:[%s146 + $0x8] sm:$0xff]
        %v180 = vadd.f32 %v174, %v178
        %v181 = vadd.f32 %v175, %v179
        %v182 = vmax.f32 %v176, %v178
        %v183 = vmax.f32 %v177, %v179
        %s184 = scalar_lea.vmem %s146, 16 [#allocation4]
        %v185 = vld [vmem:[%s184] sm:$0xff]
        %v186 = vld [vmem:[%s184 + $0x8] sm:$0xff]
        %v187 = vadd.f32 %v180, %v185
        %v188 = vadd.f32 %v181, %v186
        %v189 = vmax.f32 %v182, %v185
        %v190 = vmax.f32 %v183, %v186
        %191 = vst [vmem:[#allocation2] sm:$0xff] %v187
        %192 = vst [vmem:[#allocation2 + $0x8] sm:$0xff] %v188
        %193 = vst [vmem:[#allocation3] sm:$0xff] %v189
        %194 = vst [vmem:[#allocation3 + $0x8] sm:$0xff] %v190
        %p195 = scmp.eq.s32.totalorder %s25, 1
        // Predicated region
        $region33: #{tpu_custom_call.1} parent=23 // pred_check
          %p196 = pneg %p195
        $region34: #{tpu_custom_call.1} parent=23 // pred_check_branch
          %198 = sbr.rel (%p196) target = $region36
        $region35: #{tpu_custom_call.1} parent=23 // pred_region
          %v199 = vmul.f32 %v187, 0.25
          %v200 = vmul.f32 %v188, 0.25
          %201 = vst [vmem:[%s164] sm:$0xff] %v199
          %202 = vst [vmem:[%s164 + $0x8] sm:$0xff] %v200
          %s203 = scalar_lea.vmem %s164, 16 [#allocation7]
          %204 = vst [vmem:[%s203] sm:$0xff] %v189
          %205 = vst [vmem:[%s203 + $0x8] sm:$0xff] %v190
        $region36: #{tpu_custom_call.1} parent=23 // pred_fallthru
          _
        %s206 = sand.u32 %s77, 1
        %s207 = scalar_lea.sflag [#allocation6], %s206
        %s208 = sand.u32 %s77, 1
        %s209 = smul.addr %s208, 32
        %s210 = scalar_lea.vmem [#allocation7], %s209
        // Predicated region
        $region37: #{tpu_custom_call.1} parent=23 // pred_check
          %p211 = pneg %p87
        $region38: #{tpu_custom_call.1} parent=23 // pred_check_branch
          %213 = sbr.rel (%p211) target = $region40
        $region39: #{tpu_custom_call.1} parent=23 // pred_region
          %s215 = ssub.s32 512, 512
          %216 = vsyncadd %s207, %s215
          %s217 = smul.addr %s24, 2
          %s218 = smul.addr %s23, 4
          %s219 = sadd.s32 %s217, %s218
          %s220 = smul.addr %s219, 128
          %s221 = scalar_lea.hbm %s1, %s220
          %s222 = sshll.u32 %s210, 4
          %s223 = int_to_ptr.vmem [resolvable:$true] %s222
          %228 = dma.vmem_to_hbm [thread:$0]  %s223, 512, %s221, %s207, 256, 256, 16
        $region40: #{tpu_custom_call.1} parent=23 // pred_fallthru
          _
      $region24: #{tpu_custom_call.1} parent=5 // pred_fallthru
        _
      %p229 = scmp.le.s32.totalorder 2, %s13
      // Predicated region
      $region41: #{tpu_custom_call.1} parent=5 // pred_check
        %p230 = pneg %p229
      $region42: #{tpu_custom_call.1} parent=5 // pred_check_branch
        %232 = sbr.rel (%p230) target = $region44
      $region43: #{tpu_custom_call.1} parent=5 // pred_region
        %s233 = ssub.s32 %s13, 2
        // Predicated region
        $region45: #{tpu_custom_call.1} parent=43 // pred_check
          %p234 = pneg %p93
        $region46: #{tpu_custom_call.1} parent=43 // pred_check_branch
          %236 = sbr.rel (%p234) target = $region48
        $region47: #{tpu_custom_call.1} parent=43 // pred_region
          %s237 = sand.u32 %s78, 1
          %s238 = scalar_lea.sflag [#allocation6], %s237
          %s239 = sand.u32 %s78, 1
          %s240 = smul.addr %s239, 32
          %s241 = scalar_lea.vmem [#allocation7], %s240
          %242 = dma.done %s238, 512
        $region48: #{tpu_custom_call.1} parent=43 // pred_fallthru
          _
      $region44: #{tpu_custom_call.1} parent=5 // pred_fallthru
        _
    $region6: #{tpu_custom_call.1} parent=1 // loop_footer
      %s17 = sadd.s32 1, %s13
    $region7: #{tpu_custom_call.1} parent=1 // loop_footer_branch
      %12 = sbr.rel target = $region3
    $region8: #{tpu_custom_call.1} parent=1 // loop_exit
      _
    %243 = vsyncpa [#allocation5], 1
    %s244 = scalar_lea.sflag [#allocation5], 1
    %245 = vsyncpa %s244, 1
    %246 = vsyncpa [#allocation6], 1
    %s247 = scalar_lea.sflag [#allocation6], 1
    %248 = vsyncpa %s247, 1

</llo_original>
